<compile_context>
chip_gen: v5e
topology: v5e:2x2
jax: 0.10.0
libtpu: 0.0.40
codegen_flags: <defaults>
</compile_context>

<pallas_src>
import functools

import jax
import jax.numpy as jnp
from jax.experimental import pallas as pl
from jax.experimental.pallas import tpu as pltpu


def _cbam_kernel(x_ref, w1_ref, w2_ref, wsp_ref, o_ref, *, H, W, HW,
                 compute_dtype):
    """One batch-tile of CBAM.

    x_ref / o_ref: (Bt, C, HWp)  -- HWp = H*W padded to a multiple of 128,
                                    pad positions of x are zero.
    w1_ref: (Cm, C)   1x1 conv C  -> Cm (bias-free)
    w2_ref: (C, Cm)   1x1 conv Cm -> C  (bias-free)
    wsp_ref: (18,) in SMEM, flattened (2, 3, 3) spatial-conv weights (f32)
    """
    Bt, C, HWp = x_ref.shape
    f32 = jnp.float32

    # Big elementwise path stays in compute_dtype (bf16 retention on v6e/v7x
    # when the input is bf16; f32 otherwise).
    x = x_ref[...].astype(compute_dtype)                     # (Bt, C, HWp)

    # ---------------- channel attention (tiny, f32) ----------------
    # AdaptiveAvgPool2d(1): lane-axis sum (pads are zero) / HW, f32 accumulate.
    avg = jnp.sum(x, axis=2, dtype=f32) * (1.0 / HW)          # (Bt, C)
    w1 = w1_ref[...].astype(f32)                              # (Cm, C)
    w2 = w2_ref[...].astype(f32)                              # (C, Cm)

    if C >= 128:
        # MXU is idle in this kernel -> two small matmuls are free filler and
        # avoid the (Bt, Cm, C) broadcast temp at large C.
        h = jax.lax.dot_general(avg, w1, (((1,), (1,)), ((), ())),
                                preferred_element_type=f32)   # (Bt, Cm)
        h = jnp.where(h > 0, h, 0.01 * h)                     # LeakyReLU(0.01)
        logits = jax.lax.dot_general(h, w2, (((1,), (1,)), ((), ())),
                                     preferred_element_type=f32)  # (Bt, C)
    else:
        # Tiny MLP on the VPU (a skinny operand would waste the MXU).
        h = jnp.sum(w1[None, :, :] * avg[:, None, :], axis=2)  # (Bt, Cm)
        h = jnp.where(h > 0, h, 0.01 * h)
        logits = jnp.sum(w2[None, :, :] * h[:, None, :], axis=2)  # (Bt, C)

    ca = jax.nn.sigmoid(logits).astype(compute_dtype)[:, :, None]  # (Bt, C, 1)

    # ------------- spatial attention inputs -------------
    # Only full-size intermediate kept live: the gated tensor (reused for the
    # final store so x can be dropped after this point).
    gated = x * ca                                            # (Bt, C, HWp)
    gmean = jnp.sum(gated, axis=1, dtype=f32) * (1.0 / C)     # (Bt, HWp)
    gmax = jnp.max(gated, axis=1).astype(f32)                 # (Bt, HWp)

    # -------- 3x3 conv (2 -> 1 channels, SAME) on flat lane-dense maps ------
    # Tap (di, dj) of the (H, W) view == static XLU rotate of the flat map by
    # di*W + dj, with precomputed edge masks zeroing out-of-bounds positions.
    pos = jax.lax.broadcasted_iota(jnp.int32, (1, HWp), 1)
    if (W & (W - 1)) == 0:                                    # power-of-two W
        col = pos & (W - 1)
        row = pos >> (W.bit_length() - 1)
    else:
        row = pos // W
        col = pos - row * W
    row_ok = {-1: row >= 1, 0: None, 1: row <= H - 2}
    col_ok = {-1: col >= 1, 0: None, 1: col <= W - 2}

    conv = jnp.zeros((Bt, HWp), f32)
    for di in (-1, 0, 1):
        for dj in (-1, 0, 1):
            w_mean = wsp_ref[(di + 1) * 3 + (dj + 1)]         # scalar (SMEM)
            w_max = wsp_ref[9 + (di + 1) * 3 + (dj + 1)]
            s = di * W + dj
            if s:
                shift = (-s) % HWp                            # left-shift by s
                sm = pltpu.roll(gmean, shift, 1)              # XLU rotate
                sx = pltpu.roll(gmax, shift, 1)
            else:
                sm, sx = gmean, gmax
            tap = w_mean * sm + w_max * sx
            valid = None
            for m in (row_ok[di], col_ok[dj]):
                if m is not None:
                    valid = m if valid is None else (valid & m)
            if valid is not None:
                tap = jnp.where(valid, tap, 0.0)              # (1,HWp) bcast
            conv = conv + tap
    sa = jax.nn.sigmoid(conv).astype(compute_dtype)[:, None, :]   # (Bt,1,HWp)

    # Fused output (x * ca) * sa -- lane-dense store.
    o_ref[...] = (gated * sa).astype(o_ref.dtype)


def cbam_pallas(x, w1, w2, w_spatial, *, batch_tile=None, compute_dtype=None):
    """x: (B, C, H, W); w1: (Cm, C); w2: (C, Cm); w_spatial: (2, 3, 3)."""
    B, C, H, W = x.shape
    HW = H * W
    HWp = ((HW + 127) // 128) * 128          # lane-dense padded spatial axis
    Cm = w1.shape[0]

    if compute_dtype is None:
        # bf16 retention on the big elementwise path when the input is bf16.
        # TODO(synk): on v5e (no bf16 VALU) pass compute_dtype=jnp.float32.
        compute_dtype = jnp.bfloat16 if x.dtype == jnp.bfloat16 else jnp.float32

    x2 = x.reshape(B, C, HW)
    if HWp != HW:
        x2 = jnp.pad(x2, ((0, 0), (0, 0), (0, HWp - HW)))     # zero pad tail
    wsp_flat = w_spatial.reshape(-1).astype(jnp.float32)      # (18,) -> SMEM

    in_itemsize = x.dtype.itemsize
    compute_itemsize = jnp.dtype(compute_dtype).itemsize
    per_batch_in = C * HWp * in_itemsize
    # VMEM liveness per batch row: double-buffered in + out blocks, plus the
    # compute-dtype x / gated intermediates, plus small f32 spatial maps.
    per_batch_vmem = (4 * per_batch_in
                      + 2 * C * HWp * compute_itemsize
                      + 8 * HWp * 4)

    TARGET_BLOCK_BYTES = 4 << 20   # ~4 MiB of input per grid step (HBM-bound)
    VMEM_BUDGET_BYTES = 44 << 20   # fits under v7x's 64 MiB physical VMEM

    if batch_tile is None:
        bt = min(B,
                 max(1, TARGET_BLOCK_BYTES // max(per_batch_in, 1)),
                 max(1, VMEM_BUDGET_BYTES // max(per_batch_vmem, 1)))
        if B >= 2:
            bt = min(bt, max(1, B // 2))     # >= 2 grid steps (dual-TC v7x)
        while B % bt:                        # divisor of B
            bt -= 1
        batch_tile = bt
    grid = (B // batch_tile,)

    est_vmem = batch_tile * per_batch_vmem + (1 << 20)
    # Raise v5e's 16 MiB default scoped limit; stay well under v7x's 64 MiB.
    vmem_limit = int(min(56 << 20, max(32 << 20, est_vmem)))

    kernel = functools.partial(_cbam_kernel, H=H, W=W, HW=HW,
                               compute_dtype=compute_dtype)

    out2 = pl.pallas_call(
        kernel,
        out_shape=jax.ShapeDtypeStruct((B, C, HWp), x.dtype),
        grid=grid,
        in_specs=[
            pl.BlockSpec((batch_tile, C, HWp), lambda b: (b, 0, 0)),
            pl.BlockSpec((Cm, C), lambda b: (0, 0)),
            pl.BlockSpec((C, Cm), lambda b: (0, 0)),
            pl.BlockSpec(memory_space=pltpu.MemorySpace.SMEM),
        ],
        out_specs=pl.BlockSpec((batch_tile, C, HWp), lambda b: (b, 0, 0)),
        compiler_params=pltpu.CompilerParams(
            dimension_semantics=("parallel",),
            vmem_limit_bytes=vmem_limit),
    )(x2, w1, w2, wsp_flat)

    if HWp != HW:
        out2 = out2[:, :, :HW]
    return out2.reshape(B, C, H, W)


def cbam_reference(x, w1, w2, w_spatial):
    """Pure-JAX reference with the PyTorch module's semantics."""
    avg = jnp.mean(x, axis=(2, 3), keepdims=True)                   # (B,C,1,1)
    h = jnp.einsum('mc,bcij->bmij', w1, avg)
    h = jnp.where(h > 0, h, 0.01 * h)                               # LeakyReLU
    ca = jax.nn.sigmoid(jnp.einsum('cm,bmij->bcij', w2, h))
    x = x * ca
    sa_in = jnp.stack([jnp.mean(x, axis=1), jnp.max(x, axis=1)], axis=1)
    conv = jax.lax.conv_general_dilated(
        sa_in, w_spatial[None], window_strides=(1, 1), padding='SAME',
        dimension_numbers=('NCHW', 'OIHW', 'NCHW'))
    sa = jax.nn.sigmoid(conv)                                       # (B,1,H,W)
    return x * sa


if __name__ == "__main__":
    B, C, H, W = 2, 4, 16, 16
    reduction_ratio = 16
    Cm = max(C // reduction_ratio, 8)   # = 8

    key = jax.random.PRNGKey(0)
    kx, k1, k2, k3 = jax.random.split(key, 4)
    x = jax.random.normal(kx, (B, C, H, W), dtype=jnp.float32)
    # Deterministic synthetic weights (shapes from the module's __init__).
    w1 = jax.random.normal(k1, (Cm, C), dtype=jnp.float32) * 0.5        # 1x1, C->Cm
    w2 = jax.random.normal(k2, (C, Cm), dtype=jnp.float32) * 0.5        # 1x1, Cm->C
    w_spatial = jax.random.normal(k3, (2, 3, 3), dtype=jnp.float32) * 0.3  # 3x3, 2->1

    out = jax.block_until_ready(cbam_pallas(x, w1, w2, w_spatial))
    ref = jax.block_until_ready(cbam_reference(x, w1, w2, w_spatial))

    assert out.shape == (B, C, H, W)
    assert jnp.allclose(out, ref, atol=1e-4, rtol=1e-4), \
        f"max abs diff = {jnp.max(jnp.abs(out - ref))}"
    print("KERNEL_OK")
</pallas_src>

<mosaic_0001>
module attributes {stable_mosaic.version = 11 : i64} {
  func.func @_cbam_kernel(%arg0: i32, %arg1: memref<1x4x256xf32, #tpu.memory_space<vmem>>, %arg2: memref<8x4xf32, #tpu.memory_space<vmem>>, %arg3: memref<4x8xf32, #tpu.memory_space<vmem>>, %arg4: memref<18xf32, #tpu.memory_space<smem>>, %arg5: memref<1x4x256xf32, #tpu.memory_space<vmem>>) attributes {dimension_semantics = [#tpu.dimension_semantics<parallel>], iteration_bounds = array<i64: 2>, scalar_prefetch = 0 : i64, scratch_operands = 0 : i64, tpu.core_type = #tpu.core_type<tc>, window_params = [{transform_indices = @transform_0, window_bounds = array<i64: 1, 4, 256>}, {pipeline_mode = #tpu.pipeline_mode<synchronous>, transform_indices = @transform_1, window_bounds = array<i64: 8, 4>}, {pipeline_mode = #tpu.pipeline_mode<synchronous>, transform_indices = @transform_2, window_bounds = array<i64: 4, 8>}, {transform_indices = @transform_3, window_bounds = array<i64: 18>}, {transform_indices = @transform_4, window_bounds = array<i64: 1, 4, 256>}]} {
    %c0 = arith.constant 0 : index
    %c0_0 = arith.constant 0 : index
    %c0_1 = arith.constant 0 : index
    %0 = vector.load %arg1[%c0, %c0_0, %c0_1] : memref<1x4x256xf32, #tpu.memory_space<vmem>>, vector<1x4x256xf32>
    %cst = arith.constant dense<0.000000e+00> : vector<1x4xf32>
    %1 = vector.multi_reduction <add>, %0, %cst [2] : vector<1x4x256xf32> to vector<1x4xf32>
    %cst_2 = arith.constant 3.906250e-03 : f32
    %2 = vector.broadcast %cst_2 : f32 to vector<1x4xf32>
    %3 = arith.mulf %1, %2 : vector<1x4xf32>
    %c0_3 = arith.constant 0 : index
    %c0_4 = arith.constant 0 : index
    %4 = vector.load %arg2[%c0_3, %c0_4] : memref<8x4xf32, #tpu.memory_space<vmem>>, vector<8x4xf32>
    %c0_5 = arith.constant 0 : index
    %c0_6 = arith.constant 0 : index
    %5 = vector.load %arg3[%c0_5, %c0_6] : memref<4x8xf32, #tpu.memory_space<vmem>>, vector<4x8xf32>
    %6 = vector.shape_cast %4 : vector<8x4xf32> to vector<1x8x4xf32>
    %7 = vector.shape_cast %3 : vector<1x4xf32> to vector<1x1x4xf32>
    %8 = vector.broadcast %7 : vector<1x1x4xf32> to vector<1x8x4xf32>
    %9 = arith.mulf %6, %8 : vector<1x8x4xf32>
    %cst_7 = arith.constant dense<0.000000e+00> : vector<1x8xf32>
    %10 = vector.multi_reduction <add>, %9, %cst_7 [2] : vector<1x8x4xf32> to vector<1x8xf32>
    %cst_8 = arith.constant 0.000000e+00 : f32
    %11 = vector.broadcast %cst_8 : f32 to vector<1x8xf32>
    %12 = arith.cmpf ogt, %10, %11 : vector<1x8xf32>
    %cst_9 = arith.constant 0.00999999977 : f32
    %13 = vector.broadcast %cst_9 : f32 to vector<1x8xf32>
    %14 = arith.mulf %13, %10 : vector<1x8xf32>
    %15 = arith.select %12, %10, %14 : vector<1x8xi1>, vector<1x8xf32>
    %16 = vector.shape_cast %5 : vector<4x8xf32> to vector<1x4x8xf32>
    %17 = vector.shape_cast %15 : vector<1x8xf32> to vector<1x1x8xf32>
    %18 = vector.broadcast %17 : vector<1x1x8xf32> to vector<1x4x8xf32>
    %19 = arith.mulf %16, %18 : vector<1x4x8xf32>
    %cst_10 = arith.constant dense<0.000000e+00> : vector<1x4xf32>
    %20 = vector.multi_reduction <add>, %19, %cst_10 [2] : vector<1x4x8xf32> to vector<1x4xf32>
    %21 = arith.negf %20 : vector<1x4xf32>
    %22 = math.exp %21 : vector<1x4xf32>
    %cst_11 = arith.constant 1.000000e+00 : f32
    %23 = vector.broadcast %cst_11 : f32 to vector<1x4xf32>
    %24 = arith.addf %23, %22 : vector<1x4xf32>
    %25 = arith.divf %23, %24 : vector<1x4xf32>
    %26 = vector.shape_cast %25 : vector<1x4xf32> to vector<1x4x1xf32>
    %27 = vector.broadcast %26 : vector<1x4x1xf32> to vector<1x4x256xf32>
    %28 = arith.mulf %0, %27 : vector<1x4x256xf32>
    %cst_12 = arith.constant dense<0.000000e+00> : vector<1x256xf32>
    %29 = vector.multi_reduction <add>, %28, %cst_12 [1] : vector<1x4x256xf32> to vector<1x256xf32>
    %cst_13 = arith.constant 2.500000e-01 : f32
    %30 = vector.broadcast %cst_13 : f32 to vector<1x256xf32>
    %31 = arith.mulf %29, %30 : vector<1x256xf32>
    %cst_14 = arith.constant dense<0xFF800000> : vector<1x256xf32>
    %32 = vector.multi_reduction <maximumf>, %28, %cst_14 [1] : vector<1x4x256xf32> to vector<1x256xf32>
    %33 = tpu.iota {dimensions = array<i32: 1>} : vector<1x256xi32>
    %c15_i32 = arith.constant 15 : i32
    %34 = vector.broadcast %c15_i32 : i32 to vector<1x256xi32>
    %35 = arith.andi %33, %34 : vector<1x256xi32>
    %c4_i32 = arith.constant 4 : i32
    %36 = vector.broadcast %c4_i32 : i32 to vector<1x256xi32>
    %37 = arith.shrsi %33, %36 : vector<1x256xi32>
    %c1_i32 = arith.constant 1 : i32
    %38 = vector.broadcast %c1_i32 : i32 to vector<1x256xi32>
    %39 = arith.cmpi sge, %37, %38 : vector<1x256xi32>
    %c14_i32 = arith.constant 14 : i32
    %40 = vector.broadcast %c14_i32 : i32 to vector<1x256xi32>
    %41 = arith.cmpi sle, %37, %40 : vector<1x256xi32>
    %c1_i32_15 = arith.constant 1 : i32
    %42 = vector.broadcast %c1_i32_15 : i32 to vector<1x256xi32>
    %43 = arith.cmpi sge, %35, %42 : vector<1x256xi32>
    %c14_i32_16 = arith.constant 14 : i32
    %44 = vector.broadcast %c14_i32_16 : i32 to vector<1x256xi32>
    %45 = arith.cmpi sle, %35, %44 : vector<1x256xi32>
    %cst_17 = arith.constant 0.000000e+00 : f32
    %46 = vector.broadcast %cst_17 : f32 to vector<1x256xf32>
    %c0_18 = arith.constant 0 : index
    %47 = memref.load %arg4[%c0_18] : memref<18xf32, #tpu.memory_space<smem>>
    %c9 = arith.constant 9 : index
    %48 = memref.load %arg4[%c9] : memref<18xf32, #tpu.memory_space<smem>>
    %c17_i32 = arith.constant 17 : i32
    %49 = tpu.dynamic_rotate %31 by %c17_i32 dim 1 : vector<1x256xf32>, i32 -> vector<1x256xf32>
    %c17_i32_19 = arith.constant 17 : i32
    %50 = tpu.dynamic_rotate %32 by %c17_i32_19 dim 1 : vector<1x256xf32>, i32 -> vector<1x256xf32>
    %51 = vector.broadcast %47 : f32 to vector<1x256xf32>
    %52 = arith.mulf %51, %49 : vector<1x256xf32>
    %53 = vector.broadcast %48 : f32 to vector<1x256xf32>
    %54 = arith.mulf %53, %50 : vector<1x256xf32>
    %55 = arith.addf %52, %54 : vector<1x256xf32>
    %56 = arith.andi %39, %43 : vector<1x256xi1>
    %cst_20 = arith.constant 0.000000e+00 : f32
    %57 = vector.broadcast %cst_20 : f32 to vector<1x256xf32>
    %58 = arith.select %56, %55, %57 : vector<1x256xi1>, vector<1x256xf32>
    %59 = arith.addf %46, %58 : vector<1x256xf32>
    %c1 = arith.constant 1 : index
    %60 = memref.load %arg4[%c1] : memref<18xf32, #tpu.memory_space<smem>>
    %c10 = arith.constant 10 : index
    %61 = memref.load %arg4[%c10] : memref<18xf32, #tpu.memory_space<smem>>
    %c16_i32 = arith.constant 16 : i32
    %62 = tpu.dynamic_rotate %31 by %c16_i32 dim 1 : vector<1x256xf32>, i32 -> vector<1x256xf32>
    %c16_i32_21 = arith.constant 16 : i32
    %63 = tpu.dynamic_rotate %32 by %c16_i32_21 dim 1 : vector<1x256xf32>, i32 -> vector<1x256xf32>
    %64 = vector.broadcast %60 : f32 to vector<1x256xf32>
    %65 = arith.mulf %64, %62 : vector<1x256xf32>
    %66 = vector.broadcast %61 : f32 to vector<1x256xf32>
    %67 = arith.mulf %66, %63 : vector<1x256xf32>
    %68 = arith.addf %65, %67 : vector<1x256xf32>
    %cst_22 = arith.constant 0.000000e+00 : f32
    %69 = vector.broadcast %cst_22 : f32 to vector<1x256xf32>
    %70 = arith.select %39, %68, %69 : vector<1x256xi1>, vector<1x256xf32>
    %71 = arith.addf %59, %70 : vector<1x256xf32>
    %c2 = arith.constant 2 : index
    %72 = memref.load %arg4[%c2] : memref<18xf32, #tpu.memory_space<smem>>
    %c11 = arith.constant 11 : index
    %73 = memref.load %arg4[%c11] : memref<18xf32, #tpu.memory_space<smem>>
    %c15_i32_23 = arith.constant 15 : i32
    %74 = tpu.dynamic_rotate %31 by %c15_i32_23 dim 1 : vector<1x256xf32>, i32 -> vector<1x256xf32>
    %c15_i32_24 = arith.constant 15 : i32
    %75 = tpu.dynamic_rotate %32 by %c15_i32_24 dim 1 : vector<1x256xf32>, i32 -> vector<1x256xf32>
    %76 = vector.broadcast %72 : f32 to vector<1x256xf32>
    %77 = arith.mulf %76, %74 : vector<1x256xf32>
    %78 = vector.broadcast %73 : f32 to vector<1x256xf32>
    %79 = arith.mulf %78, %75 : vector<1x256xf32>
    %80 = arith.addf %77, %79 : vector<1x256xf32>
    %81 = arith.andi %39, %45 : vector<1x256xi1>
    %cst_25 = arith.constant 0.000000e+00 : f32
    %82 = vector.broadcast %cst_25 : f32 to vector<1x256xf32>
    %83 = arith.select %81, %80, %82 : vector<1x256xi1>, vector<1x256xf32>
    %84 = arith.addf %71, %83 : vector<1x256xf32>
    %c3 = arith.constant 3 : index
    %85 = memref.load %arg4[%c3] : memref<18xf32, #tpu.memory_space<smem>>
    %c12 = arith.constant 12 : index
    %86 = memref.load %arg4[%c12] : memref<18xf32, #tpu.memory_space<smem>>
    %c1_i32_26 = arith.constant 1 : i32
    %87 = tpu.dynamic_rotate %31 by %c1_i32_26 dim 1 : vector<1x256xf32>, i32 -> vector<1x256xf32>
    %c1_i32_27 = arith.constant 1 : i32
    %88 = tpu.dynamic_rotate %32 by %c1_i32_27 dim 1 : vector<1x256xf32>, i32 -> vector<1x256xf32>
    %89 = vector.broadcast %85 : f32 to vector<1x256xf32>
    %90 = arith.mulf %89, %87 : vector<1x256xf32>
    %91 = vector.broadcast %86 : f32 to vector<1x256xf32>
    %92 = arith.mulf %91, %88 : vector<1x256xf32>
    %93 = arith.addf %90, %92 : vector<1x256xf32>
    %cst_28 = arith.constant 0.000000e+00 : f32
    %94 = vector.broadcast %cst_28 : f32 to vector<1x256xf32>
    %95 = arith.select %43, %93, %94 : vector<1x256xi1>, vector<1x256xf32>
    %96 = arith.addf %84, %95 : vector<1x256xf32>
    %c4 = arith.constant 4 : index
    %97 = memref.load %arg4[%c4] : memref<18xf32, #tpu.memory_space<smem>>
    %c13 = arith.constant 13 : index
    %98 = memref.load %arg4[%c13] : memref<18xf32, #tpu.memory_space<smem>>
    %99 = vector.broadcast %97 : f32 to vector<1x256xf32>
    %100 = arith.mulf %99, %31 : vector<1x256xf32>
    %101 = vector.broadcast %98 : f32 to vector<1x256xf32>
    %102 = arith.mulf %101, %32 : vector<1x256xf32>
    %103 = arith.addf %100, %102 : vector<1x256xf32>
    %104 = arith.addf %96, %103 : vector<1x256xf32>
    %c5 = arith.constant 5 : index
    %105 = memref.load %arg4[%c5] : memref<18xf32, #tpu.memory_space<smem>>
    %c14 = arith.constant 14 : index
    %106 = memref.load %arg4[%c14] : memref<18xf32, #tpu.memory_space<smem>>
    %c255_i32 = arith.constant 255 : i32
    %107 = tpu.dynamic_rotate %31 by %c255_i32 dim 1 : vector<1x256xf32>, i32 -> vector<1x256xf32>
    %c255_i32_29 = arith.constant 255 : i32
    %108 = tpu.dynamic_rotate %32 by %c255_i32_29 dim 1 : vector<1x256xf32>, i32 -> vector<1x256xf32>
    %109 = vector.broadcast %105 : f32 to vector<1x256xf32>
    %110 = arith.mulf %109, %107 : vector<1x256xf32>
    %111 = vector.broadcast %106 : f32 to vector<1x256xf32>
    %112 = arith.mulf %111, %108 : vector<1x256xf32>
    %113 = arith.addf %110, %112 : vector<1x256xf32>
    %cst_30 = arith.constant 0.000000e+00 : f32
    %114 = vector.broadcast %cst_30 : f32 to vector<1x256xf32>
    %115 = arith.select %45, %113, %114 : vector<1x256xi1>, vector<1x256xf32>
    %116 = arith.addf %104, %115 : vector<1x256xf32>
    %c6 = arith.constant 6 : index
    %117 = memref.load %arg4[%c6] : memref<18xf32, #tpu.memory_space<smem>>
    %c15 = arith.constant 15 : index
    %118 = memref.load %arg4[%c15] : memref<18xf32, #tpu.memory_space<smem>>
    %c241_i32 = arith.constant 241 : i32
    %119 = tpu.dynamic_rotate %31 by %c241_i32 dim 1 : vector<1x256xf32>, i32 -> vector<1x256xf32>
    %c241_i32_31 = arith.constant 241 : i32
    %120 = tpu.dynamic_rotate %32 by %c241_i32_31 dim 1 : vector<1x256xf32>, i32 -> vector<1x256xf32>
    %121 = vector.broadcast %117 : f32 to vector<1x256xf32>
    %122 = arith.mulf %121, %119 : vector<1x256xf32>
    %123 = vector.broadcast %118 : f32 to vector<1x256xf32>
    %124 = arith.mulf %123, %120 : vector<1x256xf32>
    %125 = arith.addf %122, %124 : vector<1x256xf32>
    %126 = arith.andi %41, %43 : vector<1x256xi1>
    %cst_32 = arith.constant 0.000000e+00 : f32
    %127 = vector.broadcast %cst_32 : f32 to vector<1x256xf32>
    %128 = arith.select %126, %125, %127 : vector<1x256xi1>, vector<1x256xf32>
    %129 = arith.addf %116, %128 : vector<1x256xf32>
    %c7 = arith.constant 7 : index
    %130 = memref.load %arg4[%c7] : memref<18xf32, #tpu.memory_space<smem>>
    %c16 = arith.constant 16 : index
    %131 = memref.load %arg4[%c16] : memref<18xf32, #tpu.memory_space<smem>>
    %c240_i32 = arith.constant 240 : i32
    %132 = tpu.dynamic_rotate %31 by %c240_i32 dim 1 : vector<1x256xf32>, i32 -> vector<1x256xf32>
    %c240_i32_33 = arith.constant 240 : i32
    %133 = tpu.dynamic_rotate %32 by %c240_i32_33 dim 1 : vector<1x256xf32>, i32 -> vector<1x256xf32>
    %134 = vector.broadcast %130 : f32 to vector<1x256xf32>
    %135 = arith.mulf %134, %132 : vector<1x256xf32>
    %136 = vector.broadcast %131 : f32 to vector<1x256xf32>
    %137 = arith.mulf %136, %133 : vector<1x256xf32>
    %138 = arith.addf %135, %137 : vector<1x256xf32>
    %cst_34 = arith.constant 0.000000e+00 : f32
    %139 = vector.broadcast %cst_34 : f32 to vector<1x256xf32>
    %140 = arith.select %41, %138, %139 : vector<1x256xi1>, vector<1x256xf32>
    %141 = arith.addf %129, %140 : vector<1x256xf32>
    %c8 = arith.constant 8 : index
    %142 = memref.load %arg4[%c8] : memref<18xf32, #tpu.memory_space<smem>>
    %c17 = arith.constant 17 : index
    %143 = memref.load %arg4[%c17] : memref<18xf32, #tpu.memory_space<smem>>
    %c239_i32 = arith.constant 239 : i32
    %144 = tpu.dynamic_rotate %31 by %c239_i32 dim 1 : vector<1x256xf32>, i32 -> vector<1x256xf32>
    %c239_i32_35 = arith.constant 239 : i32
    %145 = tpu.dynamic_rotate %32 by %c239_i32_35 dim 1 : vector<1x256xf32>, i32 -> vector<1x256xf32>
    %146 = vector.broadcast %142 : f32 to vector<1x256xf32>
    %147 = arith.mulf %146, %144 : vector<1x256xf32>
    %148 = vector.broadcast %143 : f32 to vector<1x256xf32>
    %149 = arith.mulf %148, %145 : vector<1x256xf32>
    %150 = arith.addf %147, %149 : vector<1x256xf32>
    %151 = arith.andi %41, %45 : vector<1x256xi1>
    %cst_36 = arith.constant 0.000000e+00 : f32
    %152 = vector.broadcast %cst_36 : f32 to vector<1x256xf32>
    %153 = arith.select %151, %150, %152 : vector<1x256xi1>, vector<1x256xf32>
    %154 = arith.addf %141, %153 : vector<1x256xf32>
    %155 = arith.negf %154 : vector<1x256xf32>
    %156 = math.exp %155 : vector<1x256xf32>
    %cst_37 = arith.constant 1.000000e+00 : f32
    %157 = vector.broadcast %cst_37 : f32 to vector<1x256xf32>
    %158 = arith.addf %157, %156 : vector<1x256xf32>
    %159 = arith.divf %157, %158 : vector<1x256xf32>
    %160 = vector.shape_cast %159 : vector<1x256xf32> to vector<1x1x256xf32>
    %161 = vector.broadcast %160 : vector<1x1x256xf32> to vector<1x4x256xf32>
    %162 = arith.mulf %28, %161 : vector<1x4x256xf32>
    %c0_38 = arith.constant 0 : index
    %c0_39 = arith.constant 0 : index
    %c0_40 = arith.constant 0 : index
    %163 = vector.load %arg5[%c0_38, %c0_39, %c0_40] : memref<1x4x256xf32, #tpu.memory_space<vmem>>, vector<1x4x256xf32>
    tpu.vector_store %arg5[%c0_38, %c0_39, %c0_40], %162 {strides = array<i32>} : memref<1x4x256xf32, #tpu.memory_space<vmem>>, vector<1x4x256xf32>,
    return
  }
  func.func @transform_0(%arg0: i32) -> (i32, i32, i32) {
    %c0_i32 = arith.constant 0 : i32
    %c0_i32_0 = arith.constant 0 : i32
    %c0_i32_1 = arith.constant 0 : i32
    return %arg0, %c0_i32, %c0_i32_0 : i32, i32, i32
  }
  func.func @transform_1(%arg0: i32) -> (i32, i32) {
    %c0_i32 = arith.constant 0 : i32
    %c0_i32_0 = arith.constant 0 : i32
    %c0_i32_1 = arith.constant 0 : i32
    return %c0_i32, %c0_i32_0 : i32, i32
  }
  func.func @transform_2(%arg0: i32) -> (i32, i32) {
    %c0_i32 = arith.constant 0 : i32
    %c0_i32_0 = arith.constant 0 : i32
    %c0_i32_1 = arith.constant 0 : i32
    return %c0_i32, %c0_i32_0 : i32, i32
  }
  func.func @transform_3(%arg0: i32) -> i32 {
    %c0_i32 = arith.constant 0 : i32
    %c0_i32_0 = arith.constant 0 : i32
    return %c0_i32 : i32
  }
  func.func @transform_4(%arg0: i32) -> (i32, i32, i32) {
    %c0_i32 = arith.constant 0 : i32
    %c0_i32_0 = arith.constant 0 : i32
    %c0_i32_1 = arith.constant 0 : i32
    return %arg0, %c0_i32, %c0_i32_0 : i32, i32, i32
  }
}

</mosaic_0001>

<llo_original>
// kernel: tpu_custom_call.1
$region0: #{tpu_custom_call.1}
  #allocation0 [shape = 'u32[]', space=smem, size = 0x4, offset = 0x4, fixed_abs, tag = 'smem constant byte address 0x4 - core index']
  #allocation1 [shape = 'u32[72,128]{1,0:T(1,128)}', space=vmem, size = 0x9000, scoped, tag = 'internal scratch']
  %s0 = inlined_call_operand.hbm [shape: f32[2,4,256], index: 0, kind: input, shape index: {}]
  %s1 = inlined_call_operand.vmem [shape: f32[8,4], index: 1, kind: input, shape index: {}]
  %s2 = inlined_call_operand.vmem [shape: f32[4,8], index: 2, kind: input, shape index: {}]
  %s3 = inlined_call_operand.vmem [shape: f32[18], index: 3, kind: input, shape index: {}]
  %s4 = inlined_call_operand.hbm [shape: f32[2,4,256], index: 4, kind: output, shape index: {}]
  %s5 = sld [smem:[#allocation0]]
  $region57: #{tpu_custom_call.1} parent=0
    _
  %s7 = ssub.s32 1, %s5
  %s8 = scalar_select 0, %s7, %s5
  $region1: #{tpu_custom_call.1} parent=0
    #allocation2 [shape = 'u8[8192]{0}', space=vmem, size = 0x2000, scoped, tag = 'input window, operand 0']
    #allocation3 [shape = 's32[2]{0}', space=sflag, size = 0x8, scoped, tag = 'scoped memory for tpu_custom_call.1']
    #allocation4 [shape = 's32[2]{0}', space=sflag, size = 0x8, scoped, tag = 'scoped memory for tpu_custom_call.1']
    #allocation5 [shape = 's32[2]{0}', space=sflag, size = 0x8, scoped, tag = 'scoped memory for tpu_custom_call.1']
    #allocation6 [shape = 'u8[512]{0}', space=smem, size = 0x200, scoped, tag = 'input window, operand 3, single buffered']
    #allocation7 [shape = 'u8[8192]{0}', space=vmem, size = 0x2000, scoped, tag = 'output window, operand 0']
    %9 = vsyncpa [#allocation3], 0
    %s10 = scalar_lea.sflag [#allocation3], 1
    %11 = vsyncpa %s10, 0
    %12 = vsyncpa [#allocation5], 0
    %13 = vsyncpa [#allocation4], 0
    %s14 = scalar_lea.sflag [#allocation4], 1
    %15 = vsyncpa %s14, 0
    loop: start=0, step=1, limit=4
    $region2: #{tpu_custom_call.1} parent=1 // loop_pre_header
      _
    $region3: #{tpu_custom_call.1} parent=1 // loop_header
      %s17 = sphi 0, %s21
      %p18 = scmp.ge.s32.totalorder %s17, 4
      %s27 = sphi 0, %s29
      %s30 = sphi 0, %s27
      %s31 = sphi 0, %s30
      %s47 = sphi 0, %s31
      %s51 = sphi 0, %s51
      %s53 = sphi 0, %s51
      %s54 = sphi 0, %s53
      %s68 = sphi 0, %s54
      %s72 = sphi 0, %s72
      %s74 = sphi 0, %s72
      %s75 = sphi 0, %s74
      %s89 = sphi 0, %s75
      %s93 = sphi 0, %s93
      %s95 = sphi 0, %s93
      %s96 = sphi 0, %s95
      %s110 = sphi 0, %s96
      %s116 = sphi 0, %s118
      %s119 = sphi 0, %s116
      %s120 = sphi 0, %s119
      %s136 = sphi 0, %s120
    $region4: #{tpu_custom_call.1} parent=1 // loop_header_branch
      %20 = sbr.rel (%p18) target = $region8
    $region5: #{tpu_custom_call.1} parent=1 // loop_body
      %s22 = ssub.s32 %s17, 1
      %s23 = ssub.s32 %s17, 2
      %s24 = sadd.s32 %s17, 1
      %s25 = ssub.s32 %s17, %s24
      %p26 = scmp.eq.s32.totalorder %s25, 0
      %s28 = sadd.s32 %s27, 1
      %s29 = scalar_select %p26, %s27, %s28
      %p32 = pneg %p26
      %p33 = scmp.eq.s32.totalorder %s17, 1
      %p34 = por %p32, %p33
      %p35 = scmp.ne.s32.totalorder %s27, %s30
      %p36 = scmp.eq.s32.totalorder %s17, 0
      %p37 = por %p35, %p36
      %p38 = scmp.ne.s32.totalorder %s27, %s30
      %p39 = scmp.eq.s32.totalorder %s22, 1
      %p40 = por %p38, %p39
      %p41 = scmp.ne.s32.totalorder %s30, %s31
      %p42 = scmp.eq.s32.totalorder %s22, 0
      %p43 = por %p41, %p42
      %p44 = scmp.ne.s32.totalorder %s30, %s31
      %p45 = scmp.eq.s32.totalorder %s23, 1
      %p46 = por %p44, %p45
      %p48 = scmp.ne.s32.totalorder %s31, %s47
      %p49 = scmp.eq.s32.totalorder %s23, 0
      %p50 = por %p48, %p49
      %s52 = sadd.s32 %s51, 1
      %p55 = scmp.eq.s32.totalorder %s17, 1
      %p56 = scmp.ne.s32.totalorder %s51, %s53
      %p57 = scmp.eq.s32.totalorder %s17, 0
      %p58 = por %p56, %p57
      %p59 = scmp.ne.s32.totalorder %s51, %s53
      %p60 = scmp.eq.s32.totalorder %s22, 1
      %p61 = por %p59, %p60
      %p62 = scmp.ne.s32.totalorder %s53, %s54
      %p63 = scmp.eq.s32.totalorder %s22, 0
      %p64 = por %p62, %p63
      %p65 = scmp.ne.s32.totalorder %s53, %s54
      %p66 = scmp.eq.s32.totalorder %s23, 1
      %p67 = por %p65, %p66
      %p69 = scmp.ne.s32.totalorder %s54, %s68
      %p70 = scmp.eq.s32.totalorder %s23, 0
      %p71 = por %p69, %p70
      %s73 = sadd.s32 %s72, 1
      %p76 = scmp.eq.s32.totalorder %s17, 1
      %p77 = scmp.ne.s32.totalorder %s72, %s74
      %p78 = scmp.eq.s32.totalorder %s17, 0
      %p79 = por %p77, %p78
      %p80 = scmp.ne.s32.totalorder %s72, %s74
      %p81 = scmp.eq.s32.totalorder %s22, 1
      %p82 = por %p80, %p81
      %p83 = scmp.ne.s32.totalorder %s74, %s75
      %p84 = scmp.eq.s32.totalorder %s22, 0
      %p85 = por %p83, %p84
      %p86 = scmp.ne.s32.totalorder %s74, %s75
      %p87 = scmp.eq.s32.totalorder %s23, 1
      %p88 = por %p86, %p87
      %p90 = scmp.ne.s32.totalorder %s75, %s89
      %p91 = scmp.eq.s32.totalorder %s23, 0
      %p92 = por %p90, %p91
      %s94 = sadd.s32 %s93, 1
      %p97 = scmp.eq.s32.totalorder %s17, 1
      %p98 = scmp.ne.s32.totalorder %s93, %s95
      %p99 = scmp.eq.s32.totalorder %s17, 0
      %p100 = por %p98, %p99
      %p101 = scmp.ne.s32.totalorder %s93, %s95
      %p102 = scmp.eq.s32.totalorder %s22, 1
      %p103 = por %p101, %p102
      %p104 = scmp.ne.s32.totalorder %s95, %s96
      %p105 = scmp.eq.s32.totalorder %s22, 0
      %p106 = por %p104, %p105
      %p107 = scmp.ne.s32.totalorder %s95, %s96
      %p108 = scmp.eq.s32.totalorder %s23, 1
      %p109 = por %p107, %p108
      %p111 = scmp.ne.s32.totalorder %s96, %s110
      %p112 = scmp.eq.s32.totalorder %s23, 0
      %p113 = por %p111, %p112
      %s114 = ssub.s32 %s17, %s24
      %p115 = scmp.eq.s32.totalorder %s114, 0
      %s117 = sadd.s32 %s116, 1
      %s118 = scalar_select %p115, %s116, %s117
      %p121 = pneg %p115
      %p122 = scmp.eq.s32.totalorder %s17, 1
      %p123 = por %p121, %p122
      %p124 = scmp.ne.s32.totalorder %s116, %s119
      %p125 = scmp.eq.s32.totalorder %s17, 0
      %p126 = por %p124, %p125
      %p127 = scmp.ne.s32.totalorder %s116, %s119
      %p128 = scmp.eq.s32.totalorder %s22, 1
      %p129 = por %p127, %p128
      %p130 = scmp.ne.s32.totalorder %s119, %s120
      %p131 = scmp.eq.s32.totalorder %s22, 0
      %p132 = por %p130, %p131
      %p133 = scmp.ne.s32.totalorder %s119, %s120
      %p134 = scmp.eq.s32.totalorder %s23, 1
      %p135 = por %p133, %p134
      %p137 = scmp.ne.s32.totalorder %s120, %s136
      %p138 = scmp.eq.s32.totalorder %s23, 0
      %p139 = por %p137, %p138
      %p140 = scmp.le.s32.totalorder 1, %s17
      %p141 = scmp.lt.s32.totalorder %s17, 3
      %p142 = pnand %p140, %p141
      %p143 = pneg %p142
      // Predicated region
      $region9: #{tpu_custom_call.1} parent=5 // pred_check
        _
      $region10: #{tpu_custom_call.1} parent=5 // pred_check_branch
        %145 = sbr.rel (%p142) target = $region12
      $region11: #{tpu_custom_call.1} parent=5 // pred_region
        %s146 = ssub.s32 %s17, 1
        // Predicated region
        $region13: #{tpu_custom_call.1} parent=11 // pred_check
          %p147 = pneg %p64
        $region14: #{tpu_custom_call.1} parent=11 // pred_check_branch
          %149 = sbr.rel (%p147) target = $region16
        $region15: #{tpu_custom_call.1} parent=11 // pred_region
          _
        $region16: #{tpu_custom_call.1} parent=11 // pred_fallthru
          _
        // Predicated region
        $region17: #{tpu_custom_call.1} parent=11 // pred_check
          %p150 = pneg %p85
        $region18: #{tpu_custom_call.1} parent=11 // pred_check_branch
          %152 = sbr.rel (%p150) target = $region20
        $region19: #{tpu_custom_call.1} parent=11 // pred_region
          _
        $region20: #{tpu_custom_call.1} parent=11 // pred_fallthru
          _
        // Predicated region
        $region21: #{tpu_custom_call.1} parent=11 // pred_check
          %p153 = pneg %p106
        $region22: #{tpu_custom_call.1} parent=11 // pred_check_branch
          %155 = sbr.rel (%p153) target = $region24
        $region23: #{tpu_custom_call.1} parent=11 // pred_region
          %157 = vsyncadd [#allocation5], 0
          %s159 = sshll.u32 %s3, 4
          %s160 = int_to_ptr.vmem [resolvable:$true] %s159
          %162 = dma.vmem_to_smem %s160, 16, [#allocation6], [#allocation5]
        $region24: #{tpu_custom_call.1} parent=11 // pred_fallthru
          _
      $region12: #{tpu_custom_call.1} parent=5 // pred_fallthru
        _
      %p163 = scmp.lt.s32.totalorder %s17, 2
      // Predicated region
      $region25: #{tpu_custom_call.1} parent=5 // pred_check
        %p164 = pneg %p163
      $region26: #{tpu_custom_call.1} parent=5 // pred_check_branch
        %166 = sbr.rel (%p164) target = $region28
      $region27: #{tpu_custom_call.1} parent=5 // pred_region
        // Predicated region
        $region29: #{tpu_custom_call.1} parent=27 // pred_check
          %p167 = pneg %p37
        $region30: #{tpu_custom_call.1} parent=27 // pred_check_branch
          %169 = sbr.rel (%p167) target = $region32
        $region31: #{tpu_custom_call.1} parent=27 // pred_region
          %s170 = sand.u32 %s27, 1
          %s171 = scalar_lea.sflag [#allocation3], %s170
          %s172 = sand.u32 %s27, 1
          %s173 = smul.addr %s172, 8
          %s174 = scalar_lea.vmem [#allocation2], %s173
          %176 = vsyncadd %s171, 0
          %s177 = smul.addr %s17, 2
          %s178 = smul.addr %s177, 4
          %s179 = scalar_lea.hbm %s0, %s178
          %s181 = sshll.u32 %s179, 4
          %s182 = int_to_ptr.hbm [resolvable:$true] %s181
          %s183 = sshll.u32 %s174, 4
          %s184 = int_to_ptr.vmem [resolvable:$true] %s183
          %186 = dma.hbm_to_vmem [thread:$0]  %s182, 128, %s184, %s171
        $region32: #{tpu_custom_call.1} parent=27 // pred_fallthru
          _
      $region28: #{tpu_custom_call.1} parent=5 // pred_fallthru
        _
      %p187 = scmp.le.s32.totalorder 1, %s17
      %p188 = scmp.lt.s32.totalorder %s17, 3
      %p189 = pnand %p187, %p188
      %p190 = pneg %p189
      // Predicated region
      $region33: #{tpu_custom_call.1} parent=5 // pred_check
        _
      $region34: #{tpu_custom_call.1} parent=5 // pred_check_branch
        %192 = sbr.rel (%p189) target = $region36
      $region35: #{tpu_custom_call.1} parent=5 // pred_region
        %s193 = ssub.s32 %s17, 1
        %s194 = sand.u32 %s30, 1
        %s195 = scalar_lea.sflag [#allocation3], %s194
        %s196 = sand.u32 %s30, 1
        %s197 = smul.addr %s196, 8
        %s198 = scalar_lea.vmem [#allocation2], %s197
        // Predicated region
        $region37: #{tpu_custom_call.1} parent=35 // pred_check
          %p199 = pneg %p43
        $region38: #{tpu_custom_call.1} parent=35 // pred_check_branch
          %201 = sbr.rel (%p199) target = $region40
        $region39: #{tpu_custom_call.1} parent=35 // pred_region
          %203 = dma.done %s195, 128
        $region40: #{tpu_custom_call.1} parent=35 // pred_fallthru
          _
        // Predicated region
        $region41: #{tpu_custom_call.1} parent=35 // pred_check
          %p204 = pneg %p106
        $region42: #{tpu_custom_call.1} parent=35 // pred_check_branch
          %206 = sbr.rel (%p204) target = $region44
        $region43: #{tpu_custom_call.1} parent=35 // pred_region
          %208 = dma.done [#allocation5], 16
        $region44: #{tpu_custom_call.1} parent=35 // pred_fallthru
          _
        %209 = sfence
        %s210 = sand.u32 %s30, 1
        %s211 = scalar_lea.sflag [#allocation3], %s210
        %s212 = sand.u32 %s30, 1
        %s213 = smul.addr %s212, 8
        %s214 = scalar_lea.vmem [#allocation2], %s213
        %p215 = pneg %p43
        %p216 = pneg %p40
        %p217 = pneg %p64
        %p218 = pneg %p61
        %p219 = pneg %p85
        %p220 = pneg %p82
        %p221 = pneg %p106
        %p222 = pneg %p103
        %p223 = pneg %p132
        %p224 = pneg %p129
        %s225 = sand.u32 %s119, 1
        %s226 = scalar_lea.sflag [#allocation4], %s225
        %s227 = sand.u32 %s119, 1
        %s228 = smul.addr %s227, 8
        %s229 = scalar_lea.vmem [#allocation7], %s228
        %v230 = vld [vmem:[%s198] sm:$0xff]
        %232 = vst [vmem:[#allocation1] ss:$2 sm:$0xff] %v230
        %v233 = vld.sshfl [vmem:[#allocation1] sm:$0xff pattern:$0x75316420]
        %v234 = vld.sshfl [vmem:[#allocation1 + $0x8] sm:$0xff pattern:$0x75316420]
        %vm237 = vcmask 1043456
        %v238 = vsel %vm237, %v233, 0.0
        %v239 = vsel %vm237, %v234, 0.0
        %v240 = vadd.f32 %v238, %v239
        %241 = vadd.xlane.f32.xlu0 %v240
        %v242 = vpop.xlane.xlu0 %241
        %v243 = vmul.f32 %v242, 0.00390625
        %v244 = vld [vmem:[%s1] sm:$0xff]
        %v245 = vld [vmem:[%s2] sm:$0xf]
        %v247 = vlaneseq
        %v248 = vand.u32 %v247, 127
        %v249 = vperm.slane %v243, %v248
        %vm250 = vcmask 1042434
        %v251 = vsel %vm250, %v249, %v249
        %vm252 = vcmask 1043459
        %v253 = vsel %vm252, %v249, %v251
        %vm254 = vcmask 1044484
        %v255 = vsel %vm254, %v249, %v253
        %vm256 = vcmask 1045509
        %v257 = vsel %vm256, %v249, %v255
        %vm258 = vcmask 1046534
        %v259 = vsel %vm258, %v249, %v257
        %vm260 = vcmask 1047559
        %v261 = vsel %vm260, %v249, %v259
        %v263 = vmul.f32 %v244, %v261
        %vm264 = vcmask 31744
        %v265 = vsel %vm264, %v263, 0.0
        %266 = vadd.xlane.f32.xlu0 %v265
        %v267 = vpop.xlane.xlu0 %266
        %vm268 = vcmp.gt.f32.partialorder %v267, 0.0
        %v269 = vmul.f32 %v267, 0.01
        %v270 = vsel %vm268, %v267, %v269
        %v272 = vperm.slane %v270, %v248
        %v273 = vsel %vm250, %v272, %v272
        %v274 = vsel %vm252, %v272, %v273
        %v276 = vmul.f32 %v245, %v274
        %vm277 = vcmask 60416
        %v278 = vsel %vm277, %v276, 0.0
        %279 = vadd.xlane.f32.xlu0 %v278
        %v280 = vpop.xlane.xlu0 %279
        %v281 = vxor.u32 %v280, 2147483648
        %v282 = vmul.f32 %v281, 1.442695
        %v283 = vpow.pop %v282
        %v284 = vadd.f32 %v283, 1.0
        %v285 = vrcp.pop %v284
        %v286 = vmul.f32 %v284, %v285
        %v287 = vsub.f32 1.0, %v286
        %v288 = vmul.f32 %v285, %v287
        %v289 = vadd.f32 %v285, %v288
        %vm290 = vweird.f32 %v284
        %vm291 = vweird.f32 %v285
        %vm292 = vmor %vm290, %vm291
        %v293 = vsel %vm292, %v285, %v289
        %v294 = vand.u32 2147483647, %v284
        %vm295 = vcmp.eq.f32.partialorder %v294, 8.507059e+37
        %v296 = vand.u32 %v284, 2147483648
        %v297 = vor.u32 1.1754944e-38, %v296
        %v298 = vsel %vm295, %v297, %v293
        %v299 = vmul.f32 1.0, %v298
        %v302 = vunpack.c.l.s4 839922192
        %v303 = vunpack.c.0.s8 %v302
        %v304 = vperm.slane %v299, %v303
        %v306 = vmul.f32 %v230, %v304
        %308 = vst [vmem:[#allocation1] ss:$2 sm:$0xff] %v306
        %v309 = vld.sshfl [vmem:[#allocation1] sm:$0xff pattern:$0x75316420]
        %v310 = vld.sshfl [vmem:[#allocation1 + $0x8] sm:$0xff pattern:$0x75316420]
        %v313 = vsel %vm237, %v309, 0.0
        %v314 = vrot.slane %v313, 4
        %v315 = vadd.f32 %v313, %v314
        %v316 = vrot.slane %v315, 2
        %v317 = vadd.f32 %v315, %v316
        %v318 = vrot.slane %v317, 1
        %v319 = vadd.f32 %v317, %v318
        %v320 = vsel %vm237, %v310, 0.0
        %v321 = vrot.slane %v320, 4
        %v322 = vadd.f32 %v320, %v321
        %v323 = vrot.slane %v322, 2
        %v324 = vadd.f32 %v322, %v323
        %v325 = vrot.slane %v324, 1
        %v326 = vadd.f32 %v324, %v325
        %v327 = vmul.f32 %v319, 0.25
        %v328 = vmul.f32 %v326, 0.25
        %329 = vst [vmem:[#allocation1] ss:$2 sm:$0xff] %v306
        %v330 = vld.sshfl [vmem:[#allocation1] sm:$0xff pattern:$0x75316420]
        %v331 = vld.sshfl [vmem:[#allocation1 + $0x8] sm:$0xff pattern:$0x75316420]
        %v334 = vsel %vm237, %v330, -inf
        %v335 = vrot.slane %v334, 4
        %v336 = vmax.f32 %v334, %v335
        %v337 = vrot.slane %v336, 2
        %v338 = vmax.f32 %v336, %v337
        %v339 = vrot.slane %v338, 1
        %v340 = vmax.f32 %v338, %v339
        %v341 = vsel %vm237, %v331, -inf
        %v342 = vrot.slane %v341, 4
        %v343 = vmax.f32 %v341, %v342
        %v344 = vrot.slane %v343, 2
        %v345 = vmax.f32 %v343, %v344
        %v346 = vrot.slane %v345, 1
        %v347 = vmax.f32 %v345, %v346
        %v348 = vadd.s32 %v248, 128
        %v349 = vand.u32 %v248, 15
        %v350 = vand.u32 %v348, 15
        %v351 = vshra.s32 %v248, 4
        %v352 = vshra.s32 %v348, 4
        %vm353 = vcmp.ge.s32.totalorder %v351, 1
        %vm354 = vcmp.ge.s32.totalorder %v352, 1
        %vm355 = vcmp.le.s32.totalorder %v351, 14
        %vm356 = vcmp.le.s32.totalorder %v352, 14
        %vm357 = vcmp.ge.s32.totalorder %v349, 1
        %vm358 = vcmp.ge.s32.totalorder %v350, 1
        %vm359 = vcmp.le.s32.totalorder %v349, 14
        %vm360 = vcmp.le.s32.totalorder %v350, 14
        %s361 = sld [smem:[#allocation6]]
        %s362 = sld [smem:[#allocation6 + $0x9]]
        %363 = vrot.lane.b32.xlu0 %v327, 17
        %v364 = vpop.permute.xlu0 %363
        %365 = vrot.lane.b32.xlu0 %v328, 17
        %v366 = vpop.permute.xlu0 %365
        %vm367 = vcmp.lt.s32.totalorder %v248, 17
        %v368 = vsel %vm367, %v364, %v366
        %v369 = vsel %vm367, %v366, %v364
        %370 = vrot.lane.b32.xlu0 %v340, 17
        %v371 = vpop.permute.xlu0 %370
        %372 = vrot.lane.b32.xlu0 %v347, 17
        %v373 = vpop.permute.xlu0 %372
        %v374 = vsel %vm367, %v371, %v373
        %v375 = vsel %vm367, %v373, %v371
        %v376 = vstv %s361
        %v377 = vmul.f32 %v376, %v369
        %v378 = vmul.f32 %v376, %v368
        %v379 = vstv %s362
        %v380 = vmul.f32 %v379, %v375
        %v381 = vmul.f32 %v379, %v374
        %v382 = vadd.f32 %v377, %v380
        %v383 = vadd.f32 %v378, %v381
        %vm384 = vmand %vm353, %vm357
        %vm385 = vmand %vm354, %vm358
        %v386 = vsel %vm384, %v382, 0.0
        %v387 = vsel %vm385, %v383, 0.0
        %v388 = vadd.f32 %v386, 0.0
        %v389 = vadd.f32 %v387, 0.0
        %s390 = sld [smem:[#allocation6 + $0x1]]
        %s391 = sld [smem:[#allocation6 + $0xa]]
        %392 = vrot.lane.b32.xlu0 %v327, 16
        %v393 = vpop.permute.xlu0 %392
        %394 = vrot.lane.b32.xlu0 %v328, 16
        %v395 = vpop.permute.xlu0 %394
        %vm396 = vcmp.lt.s32.totalorder %v248, 16
        %v397 = vsel %vm396, %v393, %v395
        %v398 = vsel %vm396, %v395, %v393
        %399 = vrot.lane.b32.xlu0 %v340, 16
        %v400 = vpop.permute.xlu0 %399
        %401 = vrot.lane.b32.xlu0 %v347, 16
        %v402 = vpop.permute.xlu0 %401
        %v403 = vsel %vm396, %v400, %v402
        %v404 = vsel %vm396, %v402, %v400
        %v405 = vstv %s390
        %v406 = vmul.f32 %v405, %v398
        %v407 = vmul.f32 %v405, %v397
        %v408 = vstv %s391
        %v409 = vmul.f32 %v408, %v404
        %v410 = vmul.f32 %v408, %v403
        %v411 = vadd.f32 %v406, %v409
        %v412 = vadd.f32 %v407, %v410
        %v413 = vsel %vm353, %v411, 0.0
        %v414 = vsel %vm354, %v412, 0.0
        %v415 = vadd.f32 %v388, %v413
        %v416 = vadd.f32 %v389, %v414
        %s417 = sld [smem:[#allocation6 + $0x2]]
        %s418 = sld [smem:[#allocation6 + $0xb]]
        %419 = vrot.lane.b32.xlu0 %v327, 15
        %v420 = vpop.permute.xlu0 %419
        %421 = vrot.lane.b32.xlu0 %v328, 15
        %v422 = vpop.permute.xlu0 %421
        %vm423 = vcmp.lt.s32.totalorder %v248, 15
        %v424 = vsel %vm423, %v420, %v422
        %v425 = vsel %vm423, %v422, %v420
        %426 = vrot.lane.b32.xlu0 %v340, 15
        %v427 = vpop.permute.xlu0 %426
        %428 = vrot.lane.b32.xlu0 %v347, 15
        %v429 = vpop.permute.xlu0 %428
        %v430 = vsel %vm423, %v427, %v429
        %v431 = vsel %vm423, %v429, %v427
        %v432 = vstv %s417
        %v433 = vmul.f32 %v432, %v425
        %v434 = vmul.f32 %v432, %v424
        %v435 = vstv %s418
        %v436 = vmul.f32 %v435, %v431
        %v437 = vmul.f32 %v435, %v430
        %v438 = vadd.f32 %v433, %v436
        %v439 = vadd.f32 %v434, %v437
        %vm440 = vmand %vm353, %vm359
        %vm441 = vmand %vm354, %vm360
        %v442 = vsel %vm440, %v438, 0.0
        %v443 = vsel %vm441, %v439, 0.0
        %v444 = vadd.f32 %v415, %v442
        %v445 = vadd.f32 %v416, %v443
        %s446 = sld [smem:[#allocation6 + $0x3]]
        %s447 = sld [smem:[#allocation6 + $0xc]]
        %448 = vrot.lane.b32.xlu0 %v327, 1
        %v449 = vpop.permute.xlu0 %448
        %450 = vrot.lane.b32.xlu0 %v328, 1
        %v451 = vpop.permute.xlu0 %450
        %vm452 = vcmp.lt.s32.totalorder %v248, 1
        %v453 = vsel %vm452, %v449, %v451
        %v454 = vsel %vm452, %v451, %v449
        %455 = vrot.lane.b32.xlu0 %v340, 1
        %v456 = vpop.permute.xlu0 %455
        %457 = vrot.lane.b32.xlu0 %v347, 1
        %v458 = vpop.permute.xlu0 %457
        %v459 = vsel %vm452, %v456, %v458
        %v460 = vsel %vm452, %v458, %v456
        %v461 = vstv %s446
        %v462 = vmul.f32 %v461, %v454
        %v463 = vmul.f32 %v461, %v453
        %v464 = vstv %s447
        %v465 = vmul.f32 %v464, %v460
        %v466 = vmul.f32 %v464, %v459
        %v467 = vadd.f32 %v462, %v465
        %v468 = vadd.f32 %v463, %v466
        %v469 = vsel %vm357, %v467, 0.0
        %v470 = vsel %vm358, %v468, 0.0
        %v471 = vadd.f32 %v444, %v469
        %v472 = vadd.f32 %v445, %v470
        %s473 = sld [smem:[#allocation6 + $0x4]]
        %s474 = sld [smem:[#allocation6 + $0xd]]
        %v475 = vstv %s473
        %v476 = vmul.f32 %v475, %v327
        %v477 = vmul.f32 %v475, %v328
        %v478 = vstv %s474
        %v479 = vmul.f32 %v478, %v340
        %v480 = vmul.f32 %v478, %v347
        %v481 = vadd.f32 %v476, %v479
        %v482 = vadd.f32 %v477, %v480
        %v483 = vadd.f32 %v471, %v481
        %v484 = vadd.f32 %v472, %v482
        %s485 = sld [smem:[#allocation6 + $0x5]]
        %s486 = sld [smem:[#allocation6 + $0xe]]
        %487 = vrot.lane.b32.xlu0 %v327, 127
        %v488 = vpop.permute.xlu0 %487
        %489 = vrot.lane.b32.xlu0 %v328, 127
        %v490 = vpop.permute.xlu0 %489
        %vm491 = vcmp.lt.s32.totalorder %v248, 127
        %v492 = vsel %vm491, %v488, %v490
        %v493 = vsel %vm491, %v490, %v488
        %494 = vrot.lane.b32.xlu0 %v340, 127
        %v495 = vpop.permute.xlu0 %494
        %496 = vrot.lane.b32.xlu0 %v347, 127
        %v497 = vpop.permute.xlu0 %496
        %v498 = vsel %vm491, %v495, %v497
        %v499 = vsel %vm491, %v497, %v495
        %v500 = vstv %s485
        %v501 = vmul.f32 %v500, %v492
        %v502 = vmul.f32 %v500, %v493
        %v503 = vstv %s486
        %v504 = vmul.f32 %v503, %v498
        %v505 = vmul.f32 %v503, %v499
        %v506 = vadd.f32 %v501, %v504
        %v507 = vadd.f32 %v502, %v505
        %v508 = vsel %vm359, %v506, 0.0
        %v509 = vsel %vm360, %v507, 0.0
        %v510 = vadd.f32 %v483, %v508
        %v511 = vadd.f32 %v484, %v509
        %s512 = sld [smem:[#allocation6 + $0x6]]
        %s513 = sld [smem:[#allocation6 + $0xf]]
        %514 = vrot.lane.b32.xlu0 %v327, 113
        %v515 = vpop.permute.xlu0 %514
        %516 = vrot.lane.b32.xlu0 %v328, 113
        %v517 = vpop.permute.xlu0 %516
        %vm518 = vcmp.lt.s32.totalorder %v248, 113
        %v519 = vsel %vm518, %v515, %v517
        %v520 = vsel %vm518, %v517, %v515
        %521 = vrot.lane.b32.xlu0 %v340, 113
        %v522 = vpop.permute.xlu0 %521
        %523 = vrot.lane.b32.xlu0 %v347, 113
        %v524 = vpop.permute.xlu0 %523
        %v525 = vsel %vm518, %v522, %v524
        %v526 = vsel %vm518, %v524, %v522
        %v527 = vstv %s512
        %v528 = vmul.f32 %v527, %v519
        %v529 = vmul.f32 %v527, %v520
        %v530 = vstv %s513
        %v531 = vmul.f32 %v530, %v525
        %v532 = vmul.f32 %v530, %v526
        %v533 = vadd.f32 %v528, %v531
        %v534 = vadd.f32 %v529, %v532
        %vm535 = vmand %vm355, %vm357
        %vm536 = vmand %vm356, %vm358
        %v537 = vsel %vm535, %v533, 0.0
        %v538 = vsel %vm536, %v534, 0.0
        %v539 = vadd.f32 %v510, %v537
        %v540 = vadd.f32 %v511, %v538
        %s541 = sld [smem:[#allocation6 + $0x7]]
        %s542 = sld [smem:[#allocation6 + $0x10]]
        %543 = vrot.lane.b32.xlu0 %v327, 112
        %v544 = vpop.permute.xlu0 %543
        %545 = vrot.lane.b32.xlu0 %v328, 112
        %v546 = vpop.permute.xlu0 %545
        %vm547 = vcmp.lt.s32.totalorder %v248, 112
        %v548 = vsel %vm547, %v544, %v546
        %v549 = vsel %vm547, %v546, %v544
        %550 = vrot.lane.b32.xlu0 %v340, 112
        %v551 = vpop.permute.xlu0 %550
        %552 = vrot.lane.b32.xlu0 %v347, 112
        %v553 = vpop.permute.xlu0 %552
        %v554 = vsel %vm547, %v551, %v553
        %v555 = vsel %vm547, %v553, %v551
        %v556 = vstv %s541
        %v557 = vmul.f32 %v556, %v548
        %v558 = vmul.f32 %v556, %v549
        %v559 = vstv %s542
        %v560 = vmul.f32 %v559, %v554
        %v561 = vmul.f32 %v559, %v555
        %v562 = vadd.f32 %v557, %v560
        %v563 = vadd.f32 %v558, %v561
        %v564 = vsel %vm355, %v562, 0.0
        %v565 = vsel %vm356, %v563, 0.0
        %v566 = vadd.f32 %v539, %v564
        %v567 = vadd.f32 %v540, %v565
        %s568 = sld [smem:[#allocation6 + $0x8]]
        %s569 = sld [smem:[#allocation6 + $0x11]]
        %570 = vrot.lane.b32.xlu0 %v327, 111
        %v571 = vpop.permute.xlu0 %570
        %572 = vrot.lane.b32.xlu0 %v328, 111
        %v573 = vpop.permute.xlu0 %572
        %vm574 = vcmp.lt.s32.totalorder %v248, 111
        %v575 = vsel %vm574, %v571, %v573
        %v576 = vsel %vm574, %v573, %v571
        %577 = vrot.lane.b32.xlu0 %v340, 111
        %v578 = vpop.permute.xlu0 %577
        %579 = vrot.lane.b32.xlu0 %v347, 111
        %v580 = vpop.permute.xlu0 %579
        %v581 = vsel %vm574, %v578, %v580
        %v582 = vsel %vm574, %v580, %v578
        %v583 = vstv %s568
        %v584 = vmul.f32 %v583, %v575
        %v585 = vmul.f32 %v583, %v576
        %v586 = vstv %s569
        %v587 = vmul.f32 %v586, %v581
        %v588 = vmul.f32 %v586, %v582
        %v589 = vadd.f32 %v584, %v587
        %v590 = vadd.f32 %v585, %v588
        %vm591 = vmand %vm355, %vm359
        %vm592 = vmand %vm356, %vm360
        %v593 = vsel %vm591, %v589, 0.0
        %v594 = vsel %vm592, %v590, 0.0
        %v595 = vadd.f32 %v566, %v593
        %v596 = vadd.f32 %v567, %v594
        %v597 = vxor.u32 %v595, 2147483648
        %v598 = vxor.u32 %v596, 2147483648
        %v599 = vmul.f32 %v597, 1.442695
        %v600 = vpow.pop %v599
        %v601 = vmul.f32 %v598, 1.442695
        %v602 = vpow.pop %v601
        %v603 = vadd.f32 %v600, 1.0
        %v604 = vadd.f32 %v602, 1.0
        %v605 = vrcp.pop %v603
        %v606 = vmul.f32 %v603, %v605
        %v607 = vsub.f32 1.0, %v606
        %v608 = vmul.f32 %v605, %v607
        %v609 = vadd.f32 %v605, %v608
        %vm610 = vweird.f32 %v603
        %vm611 = vweird.f32 %v605
        %vm612 = vmor %vm610, %vm611
        %v613 = vsel %vm612, %v605, %v609
        %v614 = vand.u32 2147483647, %v603
        %vm615 = vcmp.eq.f32.partialorder %v614, 8.507059e+37
        %v616 = vand.u32 %v603, 2147483648
        %v617 = vor.u32 1.1754944e-38, %v616
        %v618 = vsel %vm615, %v617, %v613
        %v619 = vmul.f32 1.0, %v618
        %v620 = vrcp.pop %v604
        %v621 = vmul.f32 %v604, %v620
        %v622 = vsub.f32 1.0, %v621
        %v623 = vmul.f32 %v620, %v622
        %v624 = vadd.f32 %v620, %v623
        %vm625 = vweird.f32 %v604
        %vm626 = vweird.f32 %v620
        %vm627 = vmor %vm625, %vm626
        %v628 = vsel %vm627, %v620, %v624
        %v629 = vand.u32 2147483647, %v604
        %vm630 = vcmp.eq.f32.partialorder %v629, 8.507059e+37
        %v631 = vand.u32 %v604, 2147483648
        %v632 = vor.u32 1.1754944e-38, %v631
        %v633 = vsel %vm630, %v632, %v628
        %v634 = vmul.f32 1.0, %v633
        %v635 = vperm.slane %v619, 0
        %v636 = vperm.slane %v634, 0
        %v639 = vrot.slane %v636, 4
        %v640 = vsel %vm237, %v635, %v639
        %v642 = vmul.f32 %v306, %v640
        %643 = vst [vmem:[%s229] sm:$0xff] %v642
        %s644 = sand.u32 %s119, 1
        %s645 = scalar_lea.sflag [#allocation4], %s644
        %s646 = sand.u32 %s119, 1
        %s647 = smul.addr %s646, 8
        %s648 = scalar_lea.vmem [#allocation7], %s647
        // Predicated region
        $region45: #{tpu_custom_call.1} parent=35 // pred_check
          %p649 = pneg %p129
        $region46: #{tpu_custom_call.1} parent=35 // pred_check_branch
          %651 = sbr.rel (%p649) target = $region48
        $region47: #{tpu_custom_call.1} parent=35 // pred_region
          %653 = vsyncadd %s645, 0
          %s654 = smul.addr %s22, 2
          %s655 = smul.addr %s654, 4
          %s656 = scalar_lea.hbm %s4, %s655
          %s658 = sshll.u32 %s648, 4
          %s659 = int_to_ptr.vmem [resolvable:$true] %s658
          %s660 = sshll.u32 %s656, 4
          %s661 = int_to_ptr.hbm [resolvable:$true] %s660
          %663 = dma.vmem_to_hbm [thread:$0]  %s659, 128, %s661, %s645
        $region48: #{tpu_custom_call.1} parent=35 // pred_fallthru
          _
      $region36: #{tpu_custom_call.1} parent=5 // pred_fallthru
        _
      %p664 = scmp.le.s32.totalorder 2, %s17
      // Predicated region
      $region49: #{tpu_custom_call.1} parent=5 // pred_check
        %p665 = pneg %p664
      $region50: #{tpu_custom_call.1} parent=5 // pred_check_branch
        %667 = sbr.rel (%p665) target = $region52
      $region51: #{tpu_custom_call.1} parent=5 // pred_region
        %s668 = ssub.s32 %s17, 2
        // Predicated region
        $region53: #{tpu_custom_call.1} parent=51 // pred_check
          %p669 = pneg %p135
        $region54: #{tpu_custom_call.1} parent=51 // pred_check_branch
          %671 = sbr.rel (%p669) target = $region56
        $region55: #{tpu_custom_call.1} parent=51 // pred_region
          %s672 = sand.u32 %s120, 1
          %s673 = scalar_lea.sflag [#allocation4], %s672
          %s674 = sand.u32 %s120, 1
          %s675 = smul.addr %s674, 8
          %s676 = scalar_lea.vmem [#allocation7], %s675
          %678 = dma.done %s673, 128
        $region56: #{tpu_custom_call.1} parent=51 // pred_fallthru
          _
      $region52: #{tpu_custom_call.1} parent=5 // pred_fallthru
        _
    $region6: #{tpu_custom_call.1} parent=1 // loop_footer
      %s21 = sadd.s32 1, %s17
    $region7: #{tpu_custom_call.1} parent=1 // loop_footer_branch
      %16 = sbr.rel target = $region3
    $region8: #{tpu_custom_call.1} parent=1 // loop_exit
      _
    %679 = vsyncpa [#allocation3], 1
    %s680 = scalar_lea.sflag [#allocation3], 1
    %681 = vsyncpa %s680, 1
    %682 = vsyncpa [#allocation4], 1
    %s683 = scalar_lea.sflag [#allocation4], 1
    %684 = vsyncpa %s683, 1
    %685 = vsyncpa [#allocation5], 1
    %s686 = scalar_lea.sflag [#allocation5], 1
    %687 = vsyncpa %s686, 1

</llo_original>
